<compile_context>
chip_gen: v6e
topology: v6e:2x2x1
jax: 0.10.0
libtpu: 0.0.40
codegen_flags: <defaults>
</compile_context>

<pallas_src>
import functools

import jax
import jax.numpy as jnp
from jax import lax
from jax.experimental import pallas as pl
from jax.experimental.pallas import tpu as pltpu

LN_EPS = 1e-5                       # PyTorch nn.LayerNorm default
_VMEM_BUDGET_BYTES = 40 * 2 ** 20   # conservative across v5e / v6e / v7x
_VMEM_LIMIT_CAP = 48 * 2 ** 20      # scoped-VMEM limit we request (< 64 MiB v7x)


def _round_up(n, m):
    return ((n + m - 1) // m) * m


def _vmem_usage(tm, K_pad, E_pad, out_bytes):
    """Conservative per-step VMEM estimate (double-buffered pipeline)."""
    return (2 * tm * K_pad * 2        # patches tile, bf16, 2 buffers
            + 2 * K_pad * E_pad * 2   # weight, bf16 (resident, 2 buffers alloc'd)
            + 2 * 3 * E_pad * 4       # bias/gamma/beta
            + 2 * tm * E_pad * out_bytes  # output tile, 2 buffers
            + 2 * tm * E_pad * 4)     # f32 matmul accumulator / LN temporaries


def _select_tile(M, K_pad, E_pad, out_bytes):
    """Largest token tile that fits the cross-generation VMEM budget."""
    tm = 128
    for cand in (2048, 1024, 512, 256, 128):
        if _vmem_usage(cand, K_pad, E_pad, out_bytes) <= _VMEM_BUDGET_BYTES:
            tm = cand
            break
    if M < tm:
        # bf16 packs 2 rows per 32-bit sublane row -> keep tiles 16-row aligned.
        tm = _round_up(max(M, 16), 16)
    return tm, _vmem_usage(tm, K_pad, E_pad, out_bytes)


def _patch_embed_kernel(p_ref, w_ref, params_ref, o_ref, *, e_true):
    """One tile of tokens: projection matmul + bias + LayerNorm over E.

    p_ref:      [tm, K_pad]    bf16 patches tile
    w_ref:      [K_pad, E_pad] bf16 weight (resident across the grid)
    params_ref: [3, E_pad]     f32  (row 0 = bias, 1 = gamma, 2 = beta)
    o_ref:      [tm, E_pad]
    """
    # MXU matmul, f32 accumulation.
    x = jnp.dot(p_ref[...], w_ref[...], preferred_element_type=jnp.float32)
    bias = params_ref[0:1, :]
    gamma = params_ref[1:2, :]
    beta = params_ref[2:3, :]
    x = x + bias                                   # padded bias cols are 0

    e_pad = x.shape[-1]
    if e_pad == e_true:
        mean = jnp.mean(x, axis=-1, keepdims=True)
        centered = x - mean
        var = jnp.mean(centered * centered, axis=-1, keepdims=True)
    else:
        # Padded columns of x are exactly zero (zero weight cols, zero bias),
        # but the statistics must be over the TRUE embed dim only.
        valid = lax.broadcasted_iota(jnp.int32, (1, e_pad), 1) < e_true
        mean = jnp.sum(x, axis=-1, keepdims=True) / e_true
        centered = jnp.where(valid, x - mean, 0.0)
        var = jnp.sum(centered * centered, axis=-1, keepdims=True) / e_true

    inv = lax.rsqrt(var + LN_EPS)
    # Reuse `centered` (padded cols are sliced off by the wrapper anyway).
    y = centered * inv * gamma + beta
    o_ref[...] = y.astype(o_ref.dtype)


def _im2col_nhwc(x, kh, kw, stride, pad):
    """Overlapping patches with K ordered (kh, kw, C); no large transpose.

    x: [B, C, H, W] (already bf16).  Returns ([B*Ho*Wo, kh*kw*C], Ho, Wo).
    """
    B, C, H, W = x.shape
    Ho = (H + 2 * pad - kh) // stride + 1
    Wo = (W + 2 * pad - kw) // stride + 1
    # Transpose only the small NCHW input, then build the 49 window slices
    # already in [B, Ho, Wo, C] order and concatenate on the minor axis.
    xh = jnp.transpose(x, (0, 2, 3, 1))                         # [B, H, W, C]
    xh = jnp.pad(xh, ((0, 0), (pad, pad), (pad, pad), (0, 0)))
    cols = []
    for i in range(kh):
        for j in range(kw):
            cols.append(
                xh[:, i:i + stride * Ho:stride, j:j + stride * Wo:stride, :])
    p = jnp.concatenate(cols, axis=-1)                          # [B,Ho,Wo,kh*kw*C]
    return p.reshape(B * Ho * Wo, kh * kw * C), Ho, Wo


@functools.partial(jax.jit, static_argnames=("patch_size", "stride"))
def overlap_patch_embed(x, conv_w, conv_b, ln_gamma, ln_beta, *,
                        patch_size=7, stride=4):
    """Forward pass of OverlapPatchEmbed.

    x:        [B, C, H, W]        (NCHW, float32)
    conv_w:   [E, C, kh, kw]      (PyTorch Conv2d weight layout)
    conv_b:   [E]
    ln_gamma: [E]
    ln_beta:  [E]
    Returns (tokens [B, Ho*Wo, E], Ho, Wo).
    """
    B, C, H, W = x.shape
    E = conv_w.shape[0]
    kh = kw = patch_size
    pad = patch_size // 2
    out_dtype = x.dtype
    out_bytes = jnp.dtype(out_dtype).itemsize

    # ---- bf16 BEFORE im2col: halves HBM traffic of the inflated patches ----
    x_bf16 = x.astype(jnp.bfloat16)
    patches, Ho, Wo = _im2col_nhwc(x_bf16, kh, kw, stride, pad)   # [M, K] bf16
    M, K = patches.shape

    # ---- lane/MXU-friendly padding -----------------------------------------
    K_pad = _round_up(K, 128)
    E_pad = _round_up(E, 128)
    tm, usage = _select_tile(M, K_pad, E_pad, out_bytes)
    M_pad = _round_up(M, tm)

    # Pad/convert kept as the direct producer of the pallas_call operand so
    # allow_input_fusion can pull it into the kernel's input DMA pipeline.
    patches_bf16 = jnp.pad(patches, ((0, M_pad - M), (0, K_pad - K)))

    # Weight: [E, C, kh, kw] -> [kh, kw, C, E] -> [K, E] to match the
    # (kh, kw, C) patch K ordering.  Tiny tensor; transpose cost negligible.
    w_mat = conv_w.astype(jnp.bfloat16).transpose(2, 3, 1, 0).reshape(K, E)
    w_bf16 = jnp.pad(w_mat, ((0, K_pad - K), (0, E_pad - E)))

    # bias / gamma / beta merged into one resident (3, E_pad) f32 block.
    params = jnp.zeros((3, E_pad), dtype=jnp.float32)
    params = params.at[0, :E].set(conv_b.astype(jnp.float32))
    params = params.at[1, :E].set(ln_gamma.astype(jnp.float32))
    params = params.at[2, :E].set(ln_beta.astype(jnp.float32))

    kernel = functools.partial(_patch_embed_kernel, e_true=E)

    vmem_limit = int(min(max(usage * 5 // 4, 32 * 2 ** 20), _VMEM_LIMIT_CAP))
    cost = pl.CostEstimate(
        flops=2 * M_pad * K_pad * E_pad + 8 * M_pad * E_pad,
        transcendentals=M_pad,
        bytes_accessed=(M_pad * K_pad * 2 + K_pad * E_pad * 2
                        + 3 * E_pad * 4 + M_pad * E_pad * out_bytes),
    )

    out = pl.pallas_call(
        kernel,
        out_shape=jax.ShapeDtypeStruct((M_pad, E_pad), out_dtype),
        grid_spec=pltpu.PrefetchScalarGridSpec(
            num_scalar_prefetch=0,
            grid=(M_pad // tm,),
            in_specs=[
                pl.BlockSpec((tm, K_pad), lambda i: (i, 0)),     # patches tile
                pl.BlockSpec((K_pad, E_pad), lambda i: (0, 0)),  # weight (resident)
                pl.BlockSpec((3, E_pad), lambda i: (0, 0)),      # bias/gamma/beta
            ],
            out_specs=pl.BlockSpec((tm, E_pad), lambda i: (i, 0)),
        ),
        compiler_params=pltpu.CompilerParams(
            dimension_semantics=("parallel",),
            vmem_limit_bytes=vmem_limit,
            allow_input_fusion=[True, False, False],
        ),
        cost_estimate=cost,
    )(patches_bf16, w_bf16, params)

    # Slice off padding; the slice+reshape fuses into the consumer under jit.
    out = out[:M, :E].reshape(B, Ho * Wo, E)
    return out, Ho, Wo


def _reference(x, conv_w, conv_b, ln_gamma, ln_beta, patch_size, stride):
    pad = patch_size // 2
    y = lax.conv_general_dilated(
        x, conv_w, window_strides=(stride, stride),
        padding=[(pad, pad), (pad, pad)],
        dimension_numbers=("NCHW", "OIHW", "NCHW"))
    y = y + conv_b.reshape(1, -1, 1, 1)
    B, E, Ho, Wo = y.shape
    t = y.reshape(B, E, Ho * Wo).transpose(0, 2, 1)          # [B, N, E]
    mean = t.mean(-1, keepdims=True)
    var = ((t - mean) ** 2).mean(-1, keepdims=True)
    t = (t - mean) / jnp.sqrt(var + LN_EPS) * ln_gamma + ln_beta
    return t, Ho, Wo


if __name__ == "__main__":
    # Small deterministic config consistent with the module's forward.
    B, C, H, W = 2, 3, 16, 16
    patch_size, stride, E = 7, 4, 32

    key = jax.random.PRNGKey(0)
    kx, kw_, kb, kg, kbe = jax.random.split(key, 5)
    x = jax.random.normal(kx, (B, C, H, W), dtype=jnp.float32)
    conv_w = jax.random.normal(kw_, (E, C, patch_size, patch_size),
                               dtype=jnp.float32) * 0.05
    conv_b = jax.random.normal(kb, (E,), dtype=jnp.float32) * 0.05
    ln_gamma = jnp.ones((E,), dtype=jnp.float32) + 0.1 * jax.random.normal(
        kg, (E,), dtype=jnp.float32)
    ln_beta = 0.1 * jax.random.normal(kbe, (E,), dtype=jnp.float32)

    out, Ho, Wo = overlap_patch_embed(
        x, conv_w, conv_b, ln_gamma, ln_beta,
        patch_size=patch_size, stride=stride)
    out = jax.block_until_ready(out)

    ref, Ho_r, Wo_r = _reference(x, conv_w, conv_b, ln_gamma, ln_beta,
                                 patch_size, stride)
    assert (Ho, Wo) == (Ho_r, Wo_r)
    assert out.shape == (B, Ho * Wo, E)
    # bf16 matmul operands => looser tolerance than a pure-f32 path.
    max_err = float(jnp.max(jnp.abs(out - ref)))
    assert jnp.allclose(out, ref, atol=3e-2, rtol=3e-2), max_err

    print("KERNEL_OK")
</pallas_src>

<mosaic_0001>
module attributes {stable_mosaic.version = 11 : i64} {
  func.func @_patch_embed_kernel(%arg0: i32, %arg1: memref<32x256xbf16, #tpu.memory_space<vmem>>, %arg2: memref<256x128xbf16, #tpu.memory_space<vmem>>, %arg3: memref<3x128xf32, #tpu.memory_space<vmem>>, %arg4: memref<32x128xf32, #tpu.memory_space<vmem>>) attributes {dimension_semantics = [#tpu.dimension_semantics<parallel>], iteration_bounds = array<i64: 1>, scalar_prefetch = 0 : i64, scratch_operands = 0 : i64, tpu.core_type = #tpu.core_type<tc>, window_params = [{transform_indices = @transform_0, window_bounds = array<i64: 32, 256>}, {pipeline_mode = #tpu.pipeline_mode<synchronous>, transform_indices = @transform_1, window_bounds = array<i64: 256, 128>}, {pipeline_mode = #tpu.pipeline_mode<synchronous>, transform_indices = @transform_2, window_bounds = array<i64: 3, 128>}, {transform_indices = @transform_3, window_bounds = array<i64: 32, 128>}]} {
    %c0 = arith.constant 0 : index
    %c0_0 = arith.constant 0 : index
    %0 = vector.load %arg1[%c0, %c0_0] : memref<32x256xbf16, #tpu.memory_space<vmem>>, vector<32x256xbf16>
    %c0_1 = arith.constant 0 : index
    %c0_2 = arith.constant 0 : index
    %1 = vector.load %arg2[%c0_1, %c0_2] : memref<256x128xbf16, #tpu.memory_space<vmem>>, vector<256x128xbf16>
    %cst = arith.constant dense<0.000000e+00> : vector<32x128xf32>
    %2 = tpu.matmul %0, %1, %cst {dimension_numbers = #tpu.dot_dimension_numbers<[1], [0], [0], [1], [0, 0, 1, 1], [], []>} : vector<32x256xbf16>, vector<256x128xbf16>, vector<32x128xf32> -> vector<32x128xf32>
    %c0_3 = arith.constant 0 : index
    %c0_4 = arith.constant 0 : index
    %3 = vector.load %arg3[%c0_3, %c0_4] : memref<3x128xf32, #tpu.memory_space<vmem>>, vector<1x128xf32>
    %c1 = arith.constant 1 : index
    %c0_5 = arith.constant 0 : index
    %4 = vector.load %arg3[%c1, %c0_5] : memref<3x128xf32, #tpu.memory_space<vmem>>, vector<1x128xf32>
    %c2 = arith.constant 2 : index
    %c0_6 = arith.constant 0 : index
    %5 = vector.load %arg3[%c2, %c0_6] : memref<3x128xf32, #tpu.memory_space<vmem>>, vector<1x128xf32>
    %6 = vector.broadcast %3 : vector<1x128xf32> to vector<32x128xf32>
    %7 = arith.addf %2, %6 : vector<32x128xf32>
    %8 = tpu.iota {dimensions = array<i32: 1>} : vector<1x128xi32>
    %c32_i32 = arith.constant 32 : i32
    %9 = vector.broadcast %c32_i32 : i32 to vector<1x128xi32>
    %10 = arith.cmpi slt, %8, %9 : vector<1x128xi32>
    %cst_7 = arith.constant dense<0.000000e+00> : vector<32xf32>
    %11 = vector.multi_reduction <add>, %7, %cst_7 [1] : vector<32x128xf32> to vector<32xf32>
    %12 = vector.shape_cast %11 : vector<32xf32> to vector<32x1xf32>
    %cst_8 = arith.constant 3.200000e+01 : f32
    %13 = vector.broadcast %cst_8 : f32 to vector<32x1xf32>
    %14 = arith.divf %12, %13 : vector<32x1xf32>
    %15 = vector.broadcast %14 : vector<32x1xf32> to vector<32x128xf32>
    %16 = arith.subf %7, %15 : vector<32x128xf32>
    %cst_9 = arith.constant 0.000000e+00 : f32
    %17 = vector.shape_cast %10 : vector<1x128xi1> to vector<1x128xi1>
    %18 = vector.broadcast %17 : vector<1x128xi1> to vector<32x128xi1>
    %19 = vector.broadcast %cst_9 : f32 to vector<32x128xf32>
    %20 = arith.select %18, %16, %19 : vector<32x128xi1>, vector<32x128xf32>
    %21 = arith.mulf %20, %20 : vector<32x128xf32>
    %cst_10 = arith.constant dense<0.000000e+00> : vector<32xf32>
    %22 = vector.multi_reduction <add>, %21, %cst_10 [1] : vector<32x128xf32> to vector<32xf32>
    %23 = vector.shape_cast %22 : vector<32xf32> to vector<32x1xf32>
    %cst_11 = arith.constant 3.200000e+01 : f32
    %24 = vector.broadcast %cst_11 : f32 to vector<32x1xf32>
    %25 = arith.divf %23, %24 : vector<32x1xf32>
    %cst_12 = arith.constant 9.99999974E-6 : f32
    %26 = vector.broadcast %cst_12 : f32 to vector<32x1xf32>
    %27 = arith.addf %25, %26 : vector<32x1xf32>
    %28 = math.rsqrt %27 : vector<32x1xf32>
    %29 = vector.broadcast %28 : vector<32x1xf32> to vector<32x128xf32>
    %30 = arith.mulf %20, %29 : vector<32x128xf32>
    %31 = vector.broadcast %4 : vector<1x128xf32> to vector<32x128xf32>
    %32 = arith.mulf %30, %31 : vector<32x128xf32>
    %33 = vector.broadcast %5 : vector<1x128xf32> to vector<32x128xf32>
    %34 = arith.addf %32, %33 : vector<32x128xf32>
    %c0_13 = arith.constant 0 : index
    %c0_14 = arith.constant 0 : index
    %35 = vector.load %arg4[%c0_13, %c0_14] : memref<32x128xf32, #tpu.memory_space<vmem>>, vector<32x128xf32>
    tpu.vector_store %arg4[%c0_13, %c0_14], %34 {strides = array<i32>} : memref<32x128xf32, #tpu.memory_space<vmem>>, vector<32x128xf32>,
    return
  }
  func.func @transform_0(%arg0: i32) -> (i32, i32) {
    %c0_i32 = arith.constant 0 : i32
    %c0_i32_0 = arith.constant 0 : i32
    return %arg0, %c0_i32 : i32, i32
  }
  func.func @transform_1(%arg0: i32) -> (i32, i32) {
    %c0_i32 = arith.constant 0 : i32
    %c0_i32_0 = arith.constant 0 : i32
    %c0_i32_1 = arith.constant 0 : i32
    return %c0_i32, %c0_i32_0 : i32, i32
  }
  func.func @transform_2(%arg0: i32) -> (i32, i32) {
    %c0_i32 = arith.constant 0 : i32
    %c0_i32_0 = arith.constant 0 : i32
    %c0_i32_1 = arith.constant 0 : i32
    return %c0_i32, %c0_i32_0 : i32, i32
  }
  func.func @transform_3(%arg0: i32) -> (i32, i32) {
    %c0_i32 = arith.constant 0 : i32
    %c0_i32_0 = arith.constant 0 : i32
    return %arg0, %c0_i32 : i32, i32
  }
}

</mosaic_0001>

<llo_original>
// kernel: overlap_patch_embed.2
$region0: #{overlap_patch_embed.2}
  #allocation0 [shape = 'u32[]', space=smem, size = 0x4, offset = 0x4, fixed_abs, tag = 'smem constant byte address 0x4 - core index']
  #allocation1 [shape = 'u32[144,128]{1,0:T(1,128)}', space=vmem, size = 0x12000, scoped, tag = 'internal scratch']
  #allocation2 [shape = 'u32[2048]{0}', space=vmem, size = 0x2000, scoped, tag = 'scoped memory for overlap_patch_embed.2']
  #allocation3 [shape = 'u32[2048]{0}', space=vmem, size = 0x2000, scoped, tag = 'scoped memory for overlap_patch_embed.2']
  #allocation4 [shape = 'u32[2048]{0}', space=vmem, size = 0x2000, scoped, tag = 'scoped memory for overlap_patch_embed.2']
  #allocation5 [shape = 'u32[2048]{0}', space=vmem, size = 0x2000, scoped, tag = 'scoped memory for overlap_patch_embed.2']
  #allocation6 [shape = 'u32[2048]{0}', space=vmem, size = 0x2000, scoped, tag = 'scoped memory for overlap_patch_embed.2']
  %s0 = inlined_call_operand.vmem [shape: bf16[256,128], index: 0, kind: input, shape index: {}]
  %s1 = inlined_call_operand.vmem [shape: f32[3,128], index: 1, kind: input, shape index: {}]
  %s2 = inlined_call_operand.vmem [shape: bf16[32,147], index: 2, kind: input, shape index: {}]
  %s3 = inlined_call_operand.<no memory space> [shape: bf16[], index: 3, kind: input, shape index: {}]
  %s4 = inlined_call_operand.hbm [shape: f32[32,128], index: 4, kind: output, shape index: {}]
  %s5 = sld [smem:[#allocation0]]
  $region22: #{overlap_patch_embed.2} parent=0
    _
  %s7 = ssub.s32 1, %s5
  %s8 = scalar_select 0, %s7, %s5
  %v9 = vstv %s3
  %v10 = vunpack.i.l.bf16 %v9
  %v12 = vunpack.i.h.bf16 %v9
  $region1: #{overlap_patch_embed.2} parent=0
    #allocation7 [shape = 'u8[16384]{0}', space=vmem, size = 0x4000, scoped, tag = 'output window, operand 0, single buffered']
    #allocation8 [shape = 's32[1]{0}', space=sflag, size = 0x4, scoped, tag = 'scoped memory for overlap_patch_embed.2']
    #allocation9 [shape = 'u8[16384]{0}', space=vmem, size = 0x4000, dematerialized = true, scoped, tag = 'FusionAdapter Buffer %fusion.1 = bf16[32,256]{1,0:T(8,128)(2,1)} fusion(%param_2.1, %param_3), kind=kLoop, calls=%fused_computation.3.clone, metadata={op_name="jit(overlap_patch_embed)/jit(_pad)/pad" stack_frame_id=16}']
    %14 = vsyncpa [#allocation8], 0
    // Predicated region
    $region2: #{overlap_patch_embed.2} parent=1 // pred_check
      _
    $region3: #{overlap_patch_embed.2} parent=1 // pred_check_branch
      %16 = sbr.rel (0) target = $region5
    $region4: #{overlap_patch_embed.2} parent=1 // pred_region
      _
    $region5: #{overlap_patch_embed.2} parent=1 // pred_fallthru
      _
    // Predicated region
    $region6: #{overlap_patch_embed.2} parent=1 // pred_check
      _
    $region7: #{overlap_patch_embed.2} parent=1 // pred_check_branch
      %18 = sbr.rel (0) target = $region9
    $region8: #{overlap_patch_embed.2} parent=1 // pred_region
      _
    $region9: #{overlap_patch_embed.2} parent=1 // pred_fallthru
      _
    // Predicated region
    $region10: #{overlap_patch_embed.2} parent=1 // pred_check
      _
    $region11: #{overlap_patch_embed.2} parent=1 // pred_check_branch
      %20 = sbr.rel (0) target = $region13
    $region12: #{overlap_patch_embed.2} parent=1 // pred_region
      _
    $region13: #{overlap_patch_embed.2} parent=1 // pred_fallthru
      _
    %v21 = vld [vmem:[%s2] sm:$0xf]
    %v22 = vunpack.c.l.bf16 %v21
    %v23 = vunpack.c.h.bf16 %v21
    %v24 = vlaneseq
    %v25 = vand.u32 %v24, 127
    %vm27 = vcmp.lt.s32.totalorder %v25, 147
    %v28 = vsel %vm27, %v22, %v10
    %v29 = vpack.c.bf16 0.0, %v28
    %s31 = ssub.s32 16, 1
    %32 = vst [vmem:[#allocation9] sm:%s31] %v29
    %s33 = scalar_lea.vmem %s2, 4
    %s35 = sor.u32 255, 127
    %s36 = sand.u32 %s35, 85
    %s37 = sshrl.u32 %s36, 1
    %s38 = sor.u32 %s36, %s37
    %s39 = sand.u32 51, %s38
    %s40 = sshrl.u32 %s39, 2
    %s41 = sor.u32 %s39, %s40
    %s42 = sand.u32 15, %s41
    %v43 = vld [vmem:[%s33] sm:%s42]
    %v44 = vunpack.c.l.bf16 %v43
    %v45 = vunpack.c.h.bf16 %v43
    %v46 = vlaneseq
    %v47 = vand.u32 %v46, 127
    %v48 = vadd.s32 %v47, 128
    %vm49 = vcmp.lt.s32.totalorder %v48, 147
    %v50 = vsel %vm49, %v44, %v10
    %s51 = scalar_lea.vmem [#allocation9], 4
    %v52 = vpack.c.bf16 0.0, %v50
    %s54 = ssub.s32 16, 1
    %55 = vst [vmem:[%s51] sm:%s54] %v52
    %s56 = scalar_lea.vmem %s2, 8
    %v57 = vld [vmem:[%s56] sm:$0xf]
    %v58 = vunpack.c.l.bf16 %v57
    %v59 = vunpack.c.h.bf16 %v57
    %v60 = vlaneseq
    %v61 = vand.u32 %v60, 127
    %vm63 = vcmp.lt.s32.totalorder %v61, 147
    %v64 = vsel %vm63, %v58, %v10
    %s65 = scalar_lea.vmem [#allocation9], 8
    %v66 = vpack.c.bf16 0.0, %v64
    %s68 = ssub.s32 16, 1
    %69 = vst [vmem:[%s65] sm:%s68] %v66
    %s70 = scalar_lea.vmem %s2, 12
    %s72 = sor.u32 255, 127
    %s73 = sand.u32 %s72, 85
    %s74 = sshrl.u32 %s73, 1
    %s75 = sor.u32 %s73, %s74
    %s76 = sand.u32 51, %s75
    %s77 = sshrl.u32 %s76, 2
    %s78 = sor.u32 %s76, %s77
    %s79 = sand.u32 15, %s78
    %v80 = vld [vmem:[%s70] sm:%s79]
    %v81 = vunpack.c.l.bf16 %v80
    %v82 = vunpack.c.h.bf16 %v80
    %v83 = vlaneseq
    %v84 = vand.u32 %v83, 127
    %v85 = vadd.s32 %v84, 128
    %vm86 = vcmp.lt.s32.totalorder %v85, 147
    %v87 = vsel %vm86, %v81, %v10
    %s88 = scalar_lea.vmem [#allocation9], 12
    %v89 = vpack.c.bf16 0.0, %v87
    %s91 = ssub.s32 16, 1
    %92 = vst [vmem:[%s88] sm:%s91] %v89
    %s93 = scalar_lea.vmem %s2, 16
    %v94 = vld [vmem:[%s93] sm:$0xf]
    %v95 = vunpack.c.l.bf16 %v94
    %v96 = vunpack.c.h.bf16 %v94
    %v97 = vlaneseq
    %v98 = vand.u32 %v97, 127
    %vm100 = vcmp.lt.s32.totalorder %v98, 147
    %v101 = vsel %vm100, %v95, %v10
    %s102 = scalar_lea.vmem [#allocation9], 16
    %v103 = vpack.c.bf16 0.0, %v101
    %s105 = ssub.s32 16, 1
    %106 = vst [vmem:[%s102] sm:%s105] %v103
    %s107 = scalar_lea.vmem %s2, 20
    %s109 = sor.u32 255, 127
    %s110 = sand.u32 %s109, 85
    %s111 = sshrl.u32 %s110, 1
    %s112 = sor.u32 %s110, %s111
    %s113 = sand.u32 51, %s112
    %s114 = sshrl.u32 %s113, 2
    %s115 = sor.u32 %s113, %s114
    %s116 = sand.u32 15, %s115
    %v117 = vld [vmem:[%s107] sm:%s116]
    %v118 = vunpack.c.l.bf16 %v117
    %v119 = vunpack.c.h.bf16 %v117
    %v120 = vlaneseq
    %v121 = vand.u32 %v120, 127
    %v122 = vadd.s32 %v121, 128
    %vm123 = vcmp.lt.s32.totalorder %v122, 147
    %v124 = vsel %vm123, %v118, %v10
    %s125 = scalar_lea.vmem [#allocation9], 20
    %v126 = vpack.c.bf16 0.0, %v124
    %s128 = ssub.s32 16, 1
    %129 = vst [vmem:[%s125] sm:%s128] %v126
    %s130 = scalar_lea.vmem %s2, 24
    %v131 = vld [vmem:[%s130] sm:$0xf]
    %v132 = vunpack.c.l.bf16 %v131
    %v133 = vunpack.c.h.bf16 %v131
    %v134 = vlaneseq
    %v135 = vand.u32 %v134, 127
    %vm137 = vcmp.lt.s32.totalorder %v135, 147
    %v138 = vsel %vm137, %v132, %v10
    %s139 = scalar_lea.vmem [#allocation9], 24
    %v140 = vpack.c.bf16 0.0, %v138
    %s142 = ssub.s32 16, 1
    %143 = vst [vmem:[%s139] sm:%s142] %v140
    %s144 = scalar_lea.vmem %s2, 28
    %s146 = sor.u32 255, 127
    %s147 = sand.u32 %s146, 85
    %s148 = sshrl.u32 %s147, 1
    %s149 = sor.u32 %s147, %s148
    %s150 = sand.u32 51, %s149
    %s151 = sshrl.u32 %s150, 2
    %s152 = sor.u32 %s150, %s151
    %s153 = sand.u32 15, %s152
    %v154 = vld [vmem:[%s144] sm:%s153]
    %v155 = vunpack.c.l.bf16 %v154
    %v156 = vunpack.c.h.bf16 %v154
    %v157 = vlaneseq
    %v158 = vand.u32 %v157, 127
    %v159 = vadd.s32 %v158, 128
    %vm160 = vcmp.lt.s32.totalorder %v159, 147
    %v161 = vsel %vm160, %v155, %v10
    %s162 = scalar_lea.vmem [#allocation9], 28
    %v163 = vpack.c.bf16 0.0, %v161
    %s165 = ssub.s32 16, 1
    %166 = vst [vmem:[%s162] sm:%s165] %v163
    %v168 = vld [vmem:[#allocation9] sm:$0xff]
    %v169 = vld [vmem:[#allocation9 + $0x8] sm:$0xff]
    %v170 = vld [vmem:[#allocation9 + $0x10] sm:$0xff]
    %v171 = vld [vmem:[#allocation9 + $0x18] sm:$0xff]
    %v172 = vld [vmem:[%s0] sm:$0xf]
    %v173 = vld [vmem:[%s0 + $0x4] sm:$0xf]
    %v174 = vld [vmem:[%s0 + $0x8] sm:$0xf]
    %v175 = vld [vmem:[%s0 + $0xc] sm:$0xf]
    %v176 = vld [vmem:[%s0 + $0x10] sm:$0xf]
    %v177 = vld [vmem:[%s0 + $0x14] sm:$0xf]
    %v178 = vld [vmem:[%s0 + $0x18] sm:$0xf]
    %v179 = vld [vmem:[%s0 + $0x1c] sm:$0xf]
    %v180 = vld [vmem:[%s0 + $0x20] sm:$0xf]
    %v181 = vld [vmem:[%s0 + $0x24] sm:$0xf]
    %v182 = vld [vmem:[%s0 + $0x28] sm:$0xf]
    %v183 = vld [vmem:[%s0 + $0x2c] sm:$0xf]
    %v184 = vld [vmem:[%s0 + $0x30] sm:$0xf]
    %v185 = vld [vmem:[%s0 + $0x34] sm:$0xf]
    %v186 = vld [vmem:[%s0 + $0x38] sm:$0xf]
    %v187 = vld [vmem:[%s0 + $0x3c] sm:$0xf]
    %v188 = vld [vmem:[%s0 + $0x40] sm:$0xf]
    %v189 = vld [vmem:[%s0 + $0x44] sm:$0xf]
    %v190 = vld [vmem:[%s0 + $0x48] sm:$0xf]
    %v191 = vld [vmem:[%s0 + $0x4c] sm:$0xf]
    %v192 = vld [vmem:[%s0 + $0x50] sm:$0xf]
    %v193 = vld [vmem:[%s0 + $0x54] sm:$0xf]
    %v194 = vld [vmem:[%s0 + $0x58] sm:$0xf]
    %v195 = vld [vmem:[%s0 + $0x5c] sm:$0xf]
    %v196 = vld [vmem:[%s0 + $0x60] sm:$0xf]
    %v197 = vld [vmem:[%s0 + $0x64] sm:$0xf]
    %v198 = vld [vmem:[%s0 + $0x68] sm:$0xf]
    %v199 = vld [vmem:[%s0 + $0x6c] sm:$0xf]
    %v200 = vld [vmem:[%s0 + $0x70] sm:$0xf]
    %v201 = vld [vmem:[%s0 + $0x74] sm:$0xf]
    %v202 = vld [vmem:[%s0 + $0x78] sm:$0xf]
    %v203 = vld [vmem:[%s0 + $0x7c] sm:$0xf]
    %v204 = vld [vmem:[%s1] sm:$0x1]
    %v205 = vld [vmem:[%s1 + $0x1] sm:$0x1]
    %v206 = vld [vmem:[%s1 + $0x2] sm:$0x1]
    %v207 = vlaneseq
    %v208 = vshrl.u32 %v207, 7
    %v209 = vsub.s32 0, %v208
    %v210 = vrot.slane %v204, %v209
    %v215 = vunpack.c.l.b16 %v168
    %v216 = vunpack.c.h.b16 %v168
    %v217 = vunpack.c.l.b16 %v169
    %v218 = vunpack.c.h.b16 %v169
    %v219 = vunpack.c.l.b16 %v170
    %v220 = vunpack.c.h.b16 %v170
    %v221 = vunpack.c.l.b16 %v171
    %v222 = vunpack.c.h.b16 %v171
    %v223 = vpack.c.b16 %v217, %v215
    %v224 = vpack.c.b16 %v218, %v216
    %v225 = vpack.c.b16 %v221, %v219
    %v226 = vpack.c.b16 %v222, %v220
    %v263 = vunpack.c.l.b16 %v172
    %v264 = vunpack.c.l.b16 %v173
    %v265 = vunpack.c.l.b16 %v174
    %v266 = vunpack.c.l.b16 %v175
    %v267 = vunpack.c.l.b16 %v176
    %v268 = vunpack.c.l.b16 %v177
    %v269 = vunpack.c.l.b16 %v178
    %v270 = vunpack.c.l.b16 %v179
    %v271 = vunpack.c.l.b16 %v180
    %v272 = vunpack.c.l.b16 %v181
    %v273 = vunpack.c.l.b16 %v182
    %v274 = vunpack.c.l.b16 %v183
    %v275 = vunpack.c.l.b16 %v184
    %v276 = vunpack.c.l.b16 %v185
    %v277 = vunpack.c.l.b16 %v186
    %v278 = vunpack.c.l.b16 %v187
    %v279 = vunpack.c.l.b16 %v188
    %v280 = vunpack.c.l.b16 %v189
    %v281 = vunpack.c.l.b16 %v190
    %v282 = vunpack.c.l.b16 %v191
    %v283 = vunpack.c.l.b16 %v192
    %v284 = vunpack.c.l.b16 %v193
    %v285 = vunpack.c.l.b16 %v194
    %v286 = vunpack.c.l.b16 %v195
    %v287 = vunpack.c.l.b16 %v196
    %v288 = vunpack.c.l.b16 %v197
    %v289 = vunpack.c.l.b16 %v198
    %v290 = vunpack.c.l.b16 %v199
    %v291 = vunpack.c.l.b16 %v200
    %v292 = vunpack.c.l.b16 %v201
    %v293 = vunpack.c.l.b16 %v202
    %v294 = vunpack.c.l.b16 %v203
    %v295 = vpack.c.b16 %v264, %v263
    %v296 = vpack.c.b16 %v266, %v265
    %v297 = vpack.c.b16 %v268, %v267
    %v298 = vpack.c.b16 %v270, %v269
    %v299 = vpack.c.b16 %v272, %v271
    %v300 = vpack.c.b16 %v274, %v273
    %v301 = vpack.c.b16 %v276, %v275
    %v302 = vpack.c.b16 %v278, %v277
    %v303 = vpack.c.b16 %v280, %v279
    %v304 = vpack.c.b16 %v282, %v281
    %v305 = vpack.c.b16 %v284, %v283
    %v306 = vpack.c.b16 %v286, %v285
    %v307 = vpack.c.b16 %v288, %v287
    %v308 = vpack.c.b16 %v290, %v289
    %v309 = vpack.c.b16 %v292, %v291
    %v310 = vpack.c.b16 %v294, %v293
    %327 = vmatprep.subr.bf16.mxu0 0
    %328 = vmatpush1.bf16.msra.mxu0 %v302
    %329 = vmatprep.subr.bf16.mxu0 0
    %330 = vmatpush1.bf16.msra.mxu0 %v301
    %331 = vmatprep.subr.bf16.mxu0 0
    %332 = vmatpush1.bf16.msra.mxu0 %v300
    %333 = vmatprep.subr.bf16.mxu0 0
    %334 = vmatpush1.bf16.msra.mxu0 %v299
    %335 = vmatprep.subr.bf16.mxu0 0
    %336 = vmatpush1.bf16.msra.mxu0 %v298
    %337 = vmatprep.subr.bf16.mxu0 0
    %338 = vmatpush1.bf16.msra.mxu0 %v297
    %339 = vmatprep.subr.bf16.mxu0 0
    %340 = vmatpush1.bf16.msra.mxu0 %v296
    %341 = vmatprep.subr.bf16.mxu0 0
    %342 = vmatpush1.bf16.msra.mxu0 %v295
    %343 = vmatprep.subr.bf16.mxu0 0
    %344 = vmatpush2.bf16.msra.mxu0 %v310
    %345 = vmatprep.subr.bf16.mxu0 0
    %346 = vmatpush2.bf16.msra.mxu0 %v309
    %347 = vmatprep.subr.bf16.mxu0 0
    %348 = vmatpush2.bf16.msra.mxu0 %v308
    %349 = vmatprep.subr.bf16.mxu0 0
    %350 = vmatpush2.bf16.msra.mxu0 %v307
    %351 = vmatprep.subr.bf16.mxu0 0
    %352 = vmatpush2.bf16.msra.mxu0 %v306
    %353 = vmatprep.subr.bf16.mxu0 0
    %354 = vmatpush2.bf16.msra.mxu0 %v305
    %355 = vmatprep.subr.bf16.mxu0 0
    %356 = vmatpush2.bf16.msra.mxu0 %v304
    %357 = vmatprep.subr.bf16.mxu0 0
    %358 = vmatpush2.bf16.msra.mxu0 %v303
    %359 = vmatprep.mubr.bf16.mxu0 %v224
    %360 = vmatmul.mubr.bf16.gmra.mxu0 %v223
    %v361 = vpop.f32.mrf.mxu0
    %v362 = vadd.f32 %v210, %v361
    %v363 = vpop.f32.mrf.mxu0
    %v364 = vpop.f32.mrf.mxu0
    %v365 = vadd.f32 %v210, %v364
    %v366 = vpop.f32.mrf.mxu0
    %367 = vmatprep.mubr.bf16.mxu0 %v226
    %368 = vmatmul.mubr.bf16.gmra.mxu0 %v225
    %v369 = vpop.f32.mrf.mxu0
    %v370 = vadd.f32 %v210, %v369
    %v371 = vpop.f32.mrf.mxu0
    %v372 = vpop.f32.mrf.mxu0
    %v373 = vadd.f32 %v210, %v372
    %v374 = vpop.f32.mrf.mxu0
    %375 = vdwg.mxu0
    %v376 = vlaneseq
    %v377 = vand.u32 %v376, 127
    %vm378 = vcmp.lt.s32.totalorder %v377, 32
    %379 = vadd.xlane.f32.xlu0 %v362
    %v380 = vpop.xlane.xlu0 %379
    %381 = vadd.xlane.f32.xlu0 %v365
    %v382 = vpop.xlane.xlu0 %381
    %383 = vadd.xlane.f32.xlu0 %v370
    %v384 = vpop.xlane.xlu0 %383
    %385 = vadd.xlane.f32.xlu0 %v373
    %v386 = vpop.xlane.xlu0 %385
    %v387 = vrcp.pop 32.0
    %v388 = vmul.f32 %v380, %v387
    %v389 = vmul.f32 %v382, %v387
    %v390 = vmul.f32 %v384, %v387
    %v391 = vmul.f32 %v386, %v387
    %v392 = vsub.f32 %v362, %v388
    %v393 = vsub.f32 %v365, %v389
    %v394 = vsub.f32 %v370, %v390
    %v395 = vsub.f32 %v373, %v391
    %v396 = vsel %vm378, 1, 0
    %vm397 = vcmp.eq.s32.totalorder %v396, 1
    %v398 = vsel %vm397, %v392, 0.0
    %v399 = vsel %vm397, %v393, 0.0
    %v400 = vsel %vm397, %v394, 0.0
    %v401 = vsel %vm397, %v395, 0.0
    %v402 = vmul.f32 %v398, %v398
    %v403 = vmul.f32 %v399, %v399
    %v404 = vmul.f32 %v400, %v400
    %v405 = vmul.f32 %v401, %v401
    %406 = vadd.xlane.f32.xlu0 %v402
    %v407 = vpop.xlane.xlu0 %406
    %408 = vadd.xlane.f32.xlu0 %v403
    %v409 = vpop.xlane.xlu0 %408
    %410 = vadd.xlane.f32.xlu0 %v404
    %v411 = vpop.xlane.xlu0 %410
    %412 = vadd.xlane.f32.xlu0 %v405
    %v413 = vpop.xlane.xlu0 %412
    %v414 = vmul.f32 %v407, %v387
    %v415 = vmul.f32 %v409, %v387
    %v416 = vmul.f32 %v411, %v387
    %v417 = vmul.f32 %v413, %v387
    %v418 = vadd.f32 %v414, 1e-05
    %v419 = vadd.f32 %v415, 1e-05
    %v420 = vadd.f32 %v416, 1e-05
    %v421 = vadd.f32 %v417, 1e-05
    %v422 = vrsqrt.pop %v418
    %v423 = vrsqrt.pop %v419
    %v424 = vrsqrt.pop %v420
    %v425 = vrsqrt.pop %v421
    %v426 = vmul.f32 %v398, %v422
    %v427 = vmul.f32 %v399, %v423
    %v428 = vmul.f32 %v400, %v424
    %v429 = vmul.f32 %v401, %v425
    %v430 = vlaneseq
    %v431 = vshrl.u32 %v430, 7
    %v432 = vsub.s32 0, %v431
    %v433 = vrot.slane %v205, %v432
    %v434 = vmul.f32 %v426, %v433
    %v435 = vmul.f32 %v427, %v433
    %v436 = vmul.f32 %v428, %v433
    %v437 = vmul.f32 %v429, %v433
    %v438 = vlaneseq
    %v439 = vshrl.u32 %v438, 7
    %v440 = vsub.s32 0, %v439
    %v441 = vrot.slane %v206, %v440
    %v442 = vadd.f32 %v434, %v441
    %v443 = vadd.f32 %v435, %v441
    %v444 = vadd.f32 %v436, %v441
    %v445 = vadd.f32 %v437, %v441
    %446 = vst [vmem:[#allocation7] sm:$0xff] %v442
    %447 = vst [vmem:[#allocation7 + $0x8] sm:$0xff] %v443
    %448 = vst [vmem:[#allocation7 + $0x10] sm:$0xff] %v444
    %449 = vst [vmem:[#allocation7 + $0x18] sm:$0xff] %v445
    // Predicated region
    $region14: #{overlap_patch_embed.2} parent=1 // pred_check
      _
    $region15: #{overlap_patch_embed.2} parent=1 // pred_check_branch
      %451 = sbr.rel (0) target = $region17
    $region16: #{overlap_patch_embed.2} parent=1 // pred_region
      %s453 = ssub.s32 512, 512
      %454 = vsyncadd [#allocation8], %s453
      %s455 = sshll.u32 [#allocation7], 4
      %s456 = int_to_ptr.vmem [resolvable:$true] %s455
      %461 = dma.vmem_to_hbm [thread:$0]  %s456, 512, %s4, [#allocation8], 128, 128, 8
    $region17: #{overlap_patch_embed.2} parent=1 // pred_fallthru
      _
    // Predicated region
    $region18: #{overlap_patch_embed.2} parent=1 // pred_check
      _
    $region19: #{overlap_patch_embed.2} parent=1 // pred_check_branch
      %463 = sbr.rel (0) target = $region21
    $region20: #{overlap_patch_embed.2} parent=1 // pred_region
      %464 = dma.done [#allocation8], 512
    $region21: #{overlap_patch_embed.2} parent=1 // pred_fallthru
      _
    %465 = vsyncpa [#allocation8], 1

</llo_original>
